<compile_context>
chip_gen: v7x
topology: tpu7x:2x2x1
jax: 0.10.0
libtpu: 0.0.40
codegen_flags: <defaults>
</compile_context>

<pallas_src>
import functools

import jax
import jax.numpy as jnp
from jax.experimental import pallas as pl
from jax.experimental.pallas import tpu as pltpu


_LANE_CANDIDATES = (2048, 1024, 512, 256, 128)  # lane-dense widths (mult. of 128)
_DEFAULT_LANE_W = 512                           # fallback width when padding
_BLOCK_F32_ELEMS = 512 * 512                    # ~1 MiB f32 per block


# ----------------------------- Pallas kernel ------------------------------- #

def _neg_scale_kernel(g_ref, o_ref, *, scale):
    # Backward hot path: grad_input = scale * grad_output, scale = -strength.
    # `scale` is a static Python float -> single immediate vmul per vreg.
    o_ref[...] = g_ref[...] * scale


def _scaled_copy(g, scale):
    """Compute scale * g with a tiled, lane-dense Pallas kernel."""
    orig_shape = g.shape
    total = g.size

    # Pick the widest lane-dense width that divides the element count so the
    # common case needs no padding; otherwise pad up to the default width.
    lane_w = None
    for cand in _LANE_CANDIDATES:
        if total % cand == 0:
            lane_w = cand
            break

    flat = g.reshape(-1)
    if lane_w is None:
        lane_w = _DEFAULT_LANE_W
        pad = (-total) % lane_w
        flat = jnp.pad(flat, (0, pad))
    else:
        pad = 0

    rows = flat.size // lane_w
    g2d = flat.reshape(rows, lane_w)

    # Cap the block at ~1 MiB of f32.  max_rows is always a multiple of 8 for
    # the candidate widths; small inputs take the full row extent instead.
    max_rows = max(8, _BLOCK_F32_ELEMS // lane_w)
    tile_r = rows if rows <= max_rows else max_rows
    grid = (pl.cdiv(rows, tile_r),)

    out2d = pl.pallas_call(
        functools.partial(_neg_scale_kernel, scale=scale),
        out_shape=jax.ShapeDtypeStruct(g2d.shape, g2d.dtype),
        grid_spec=pltpu.PrefetchScalarGridSpec(
            num_scalar_prefetch=0,
            grid=grid,
            in_specs=[pl.BlockSpec((tile_r, lane_w), lambda i: (i, 0))],
            out_specs=pl.BlockSpec((tile_r, lane_w), lambda i: (i, 0)),
        ),
        compiler_params=pltpu.CompilerParams(
            dimension_semantics=("parallel",),
        ),
        # The cotangent is dead after this kernel: write grad_input in place.
        input_output_aliases={0: 0},
    )(g2d)

    out_flat = out2d.reshape(-1)
    if pad:
        out_flat = out_flat[:total]
    return out_flat.reshape(orig_shape)


# ------------------------------ RevGrad module ----------------------------- #

def make_rev_grad(grad_rev_strength):
    """Returns a function equivalent to RevGrad(grad_rev_strength).forward."""
    # Fold the sign into a static Python float (no traced constant capture).
    scale = -float(grad_rev_strength)

    @jax.custom_vjp
    def rev_grad(x):
        # Forward is a pure identity: no HBM traffic, VJP gives RevGrad.
        return x

    def rev_grad_fwd(x):
        return x, None

    def rev_grad_bwd(_, g):
        return (_scaled_copy(g, scale),)

    rev_grad.defvjp(rev_grad_fwd, rev_grad_bwd)
    return rev_grad


# ----------------------------------- main ----------------------------------- #

if __name__ == "__main__":
    key = jax.random.PRNGKey(0)
    # NCHW, small shapes (batch=2, channels=4, spatial=16)
    x = jax.random.normal(key, (2, 4, 16, 16), dtype=jnp.float32)

    grad_rev_strength = 0.5
    rev_grad = make_rev_grad(grad_rev_strength)

    # Forward: identity
    y = rev_grad(x)
    y = jax.block_until_ready(y)
    assert y.shape == x.shape and y.dtype == x.dtype
    assert bool(jnp.allclose(y, x)), "forward must be identity"

    # Backward: reversed & scaled gradient (runs the Pallas kernel)
    def loss(x):
        return jnp.sum(rev_grad(x) * 2.0)

    g = jax.grad(loss)(x)
    g = jax.block_until_ready(g)
    expected = -grad_rev_strength * jnp.full_like(x, 2.0)
    assert bool(jnp.allclose(g, expected)), "backward must be -strength * grad"

    # Also exercise a shape that forces the padding path (odd element count).
    x_odd = jax.random.normal(key, (3, 5, 7), dtype=jnp.float32)
    g_odd = jax.grad(lambda t: jnp.sum(rev_grad(t)))(x_odd)
    g_odd = jax.block_until_ready(g_odd)
    assert bool(jnp.allclose(g_odd, jnp.full_like(x_odd, -grad_rev_strength)))

    print("KERNEL_OK")
</pallas_src>

<mosaic_0001>
module attributes {stable_mosaic.version = 11 : i64} {
  func.func @_neg_scale_kernel(%arg0: i32, %arg1: memref<1x2048xf32, #tpu.memory_space<vmem>>, %arg2: memref<1x2048xf32, #tpu.memory_space<vmem>>) attributes {dimension_semantics = [#tpu.dimension_semantics<parallel>], iteration_bounds = array<i64: 1>, scalar_prefetch = 0 : i64, scratch_operands = 0 : i64, tpu.core_type = #tpu.core_type<tc>, window_params = [{transform_indices = @transform_0, window_bounds = array<i64: 1, 2048>}, {transform_indices = @transform_1, window_bounds = array<i64: 1, 2048>}]} {
    %c0 = arith.constant 0 : index
    %c0_0 = arith.constant 0 : index
    %0 = vector.load %arg1[%c0, %c0_0] : memref<1x2048xf32, #tpu.memory_space<vmem>>, vector<1x2048xf32>
    %cst = arith.constant -5.000000e-01 : f32
    %1 = vector.broadcast %cst : f32 to vector<1x2048xf32>
    %2 = arith.mulf %0, %1 : vector<1x2048xf32>
    %c0_1 = arith.constant 0 : index
    %c0_2 = arith.constant 0 : index
    %3 = vector.load %arg2[%c0_1, %c0_2] : memref<1x2048xf32, #tpu.memory_space<vmem>>, vector<1x2048xf32>
    tpu.vector_store %arg2[%c0_1, %c0_2], %2 {strides = array<i32>} : memref<1x2048xf32, #tpu.memory_space<vmem>>, vector<1x2048xf32>,
    return
  }
  func.func @transform_0(%arg0: i32) -> (i32, i32) {
    %c0_i32 = arith.constant 0 : i32
    %c0_i32_0 = arith.constant 0 : i32
    return %arg0, %c0_i32 : i32, i32
  }
  func.func @transform_1(%arg0: i32) -> (i32, i32) {
    %c0_i32 = arith.constant 0 : i32
    %c0_i32_0 = arith.constant 0 : i32
    return %arg0, %c0_i32 : i32, i32
  }
}

</mosaic_0001>

<llo_original>
// kernel: tpu_custom_call.1
$region0: #{tpu_custom_call.1}
  #allocation0 [shape = 'u32[]', space=smem, size = 0x4, offset = 0x4, fixed_abs, tag = 'smem constant byte address 0x4 - core index']
  #allocation1 [shape = 'u32[144,128]{1,0:T(1,128)}', space=vmem, size = 0x12000, scoped, tag = 'internal scratch']
  %s0 = inlined_call_operand.hbm [shape: f32[1,2048], index: 0, kind: input, shape index: {}, may-alias: {0,1}]
  %s1 = inlined_call_operand.hbm [shape: f32[1,2048], index: 1, kind: output, shape index: {}, may-alias: {0,1}]
  %s2 = sld [smem:[#allocation0]]
  $region18: #{tpu_custom_call.1} parent=0
    _
  %s4 = ssub.s32 1, %s2
  %s5 = scalar_select 0, %s4, %s2
  $region1: #{tpu_custom_call.1} parent=0
    #allocation2 [shape = 'u8[8192]{0}', space=vmem, size = 0x2000, scoped, tag = 'input window, operand 0, single buffered']
    #allocation3 [shape = 's32[1]{0}', space=sflag, size = 0x4, scoped, tag = 'scoped memory for tpu_custom_call.1']
    #allocation4 [shape = 's32[1]{0}', space=sflag, size = 0x4, scoped, tag = 'scoped memory for tpu_custom_call.1']
    #allocation5 [shape = 'u8[8192]{0}', space=vmem, size = 0x2000, scoped, tag = 'output window, operand 0, single buffered']
    %6 = vsyncpa [#allocation3], 0
    %7 = vsyncpa [#allocation4], 0
    // Predicated region
    $region2: #{tpu_custom_call.1} parent=1 // pred_check
      _
    $region3: #{tpu_custom_call.1} parent=1 // pred_check_branch
      %9 = sbr.rel (0) target = $region5
    $region4: #{tpu_custom_call.1} parent=1 // pred_region
      %s11 = ssub.s32 256, 256
      %12 = vsyncadd [#allocation3], %s11
      %s14 = sshll.u32 [#allocation2], 4
      %s15 = int_to_ptr.vmem [resolvable:$true] %s14
      %17 = dma.hbm_to_vmem [thread:$0]  %s0, 256, %s15, [#allocation3]
    $region5: #{tpu_custom_call.1} parent=1 // pred_fallthru
      _
    // Predicated region
    $region6: #{tpu_custom_call.1} parent=1 // pred_check
      _
    $region7: #{tpu_custom_call.1} parent=1 // pred_check_branch
      %19 = sbr.rel (0) target = $region9
    $region8: #{tpu_custom_call.1} parent=1 // pred_region
      %20 = dma.done [#allocation3], 256
    $region9: #{tpu_custom_call.1} parent=1 // pred_fallthru
      _
    %v21 = vld [vmem:[#allocation2] sm:$0xff]
    %v22 = vld [vmem:[#allocation2 + $0x8] sm:$0xff]
    %v23 = vmul.f32 %v21, -0.5
    %v24 = vmul.f32 %v22, -0.5
    %25 = vst [vmem:[#allocation5] sm:$0xff] %v23
    %26 = vst [vmem:[#allocation5 + $0x8] sm:$0xff] %v24
    // Predicated region
    $region10: #{tpu_custom_call.1} parent=1 // pred_check
      _
    $region11: #{tpu_custom_call.1} parent=1 // pred_check_branch
      %28 = sbr.rel (0) target = $region13
    $region12: #{tpu_custom_call.1} parent=1 // pred_region
      %s30 = ssub.s32 256, 256
      %31 = vsyncadd [#allocation4], %s30
      %s33 = sshll.u32 [#allocation5], 4
      %s34 = int_to_ptr.vmem [resolvable:$true] %s33
      %36 = dma.vmem_to_hbm [thread:$0]  %s34, 256, %s1, [#allocation4]
    $region13: #{tpu_custom_call.1} parent=1 // pred_fallthru
      _
    // Predicated region
    $region14: #{tpu_custom_call.1} parent=1 // pred_check
      _
    $region15: #{tpu_custom_call.1} parent=1 // pred_check_branch
      %38 = sbr.rel (0) target = $region17
    $region16: #{tpu_custom_call.1} parent=1 // pred_region
      %39 = dma.done [#allocation4], 256
    $region17: #{tpu_custom_call.1} parent=1 // pred_fallthru
      _
    %40 = vsyncpa [#allocation3], 1
    %41 = vsyncpa [#allocation4], 1

</llo_original>
